<compile_context>
chip_gen: v7x
topology: tpu7x:2x2x1
jax: 0.10.0
libtpu: 0.0.40
codegen_flags: <defaults>
</compile_context>

<pallas_src>
import jax
import jax.numpy as jnp
from jax import lax
from jax.experimental import pallas as pl
from jax.experimental.pallas import tpu as pltpu

EPS = 1e-5


def fbn_kernel(xr_ref, xi_ref, gr_ref, gi_ref, br_ref, bi_ref, or_ref, oi_ref):
    xr = xr_ref[...]                       # (ROWS, H*W) real part
    xi = xi_ref[...]                       # (ROWS, H*W) imag part

    # complex mean over the spatial (lane) axis, per row
    mean_r = jnp.mean(xr, axis=-1, keepdims=True)
    mean_i = jnp.mean(xi, axis=-1, keepdims=True)

    cr = xr - mean_r
    ci = xi - mean_i

    # torch.var (unbiased=False) for complex = E[|x - mean|^2], real-valued
    var = (jnp.mean(cr * cr, axis=-1, keepdims=True)
           + jnp.mean(ci * ci, axis=-1, keepdims=True))
    inv = lax.rsqrt(var + EPS)

    nr = cr * inv
    ni = ci * inv

    # per-row complex affine: gamma * n + beta (broadcast (ROWS,1) over lanes)
    gr = gr_ref[...]
    gi = gi_ref[...]
    br = br_ref[...]
    bi = bi_ref[...]

    or_ref[...] = gr * nr - gi * ni + br
    oi_ref[...] = gr * ni + gi * nr + bi


def _pick_rows(num_rows, hw, target_plane_bytes=1 << 20):
    """Rows per block: ~1 MiB plane blocks, sublane-aligned, keep grid >= ~8."""
    if num_rows <= 8:
        return num_rows
    rows_from_bytes = target_plane_bytes // (hw * 4)
    rows_from_split = -(-num_rows // 8)        # keep >= ~8 steps (v7x megacore)
    rows = max(8, min(rows_from_bytes, rows_from_split))
    rows = max(8, (rows // 8) * 8)             # sublane (8) alignment
    return min(rows, num_rows)


def frequency_batch_norm_2d(x, gamma, beta):
    """x: complex64 (N, C, H, W); gamma, beta: complex64 (C,)."""
    N, C, H, W = x.shape
    R = N * C
    HW = H * W

    # Split into lane-dense f32 planes (free reshape for contiguous NCHW).
    xr = jnp.real(x).astype(jnp.float32).reshape(R, HW)
    xi = jnp.imag(x).astype(jnp.float32).reshape(R, HW)

    # Pre-expand per-channel params to per-row (N*C, 1) columns.
    gr = jnp.broadcast_to(jnp.real(gamma).astype(jnp.float32), (N, C)).reshape(R, 1)
    gi = jnp.broadcast_to(jnp.imag(gamma).astype(jnp.float32), (N, C)).reshape(R, 1)
    br = jnp.broadcast_to(jnp.real(beta).astype(jnp.float32), (N, C)).reshape(R, 1)
    bi = jnp.broadcast_to(jnp.imag(beta).astype(jnp.float32), (N, C)).reshape(R, 1)

    rows = _pick_rows(R, HW)
    grid = (pl.cdiv(R, rows),)

    x_spec = pl.BlockSpec((rows, HW), lambda i: (i, 0))
    p_spec = pl.BlockSpec((rows, 1), lambda i: (i, 0))

    # 4 planes (xr, xi, out_r, out_i) x 2 pipeline buffers + slack; keep the
    # limit within every generation's physical VMEM (<= 64 MiB for v7x).
    block_bytes = rows * HW * 4
    vmem_limit = int(min(64 << 20, max(16 << 20, 8 * block_bytes + (2 << 20))))

    out_r, out_i = pl.pallas_call(
        fbn_kernel,
        out_shape=(jax.ShapeDtypeStruct((R, HW), jnp.float32),
                   jax.ShapeDtypeStruct((R, HW), jnp.float32)),
        grid_spec=pl.GridSpec(
            grid=grid,
            in_specs=[x_spec, x_spec, p_spec, p_spec, p_spec, p_spec],
            out_specs=(x_spec, x_spec),
        ),
        compiler_params=pltpu.CompilerParams(
            dimension_semantics=("parallel",),
            vmem_limit_bytes=vmem_limit),
    )(xr, xi, gr, gi, br, bi)

    out = lax.complex(out_r, out_i).reshape(N, C, H, W)
    return out.astype(jnp.complex64)


if __name__ == "__main__":
    key = jax.random.PRNGKey(0)
    k_xr, k_xi, k_gr, k_gi, k_br, k_bi = jax.random.split(key, 6)

    N, C, H, W = 2, 4, 16, 16

    xr = jax.random.normal(k_xr, (N, C, H, W), dtype=jnp.float32)
    xi = jax.random.normal(k_xi, (N, C, H, W), dtype=jnp.float32)
    x = (xr + 1j * xi).astype(jnp.complex64)

    # Parameter shapes per the module's __init__ (num_features = C, complex64).
    # Non-trivial values exercise the complex affine path.
    gamma = (jax.random.normal(k_gr, (C,), dtype=jnp.float32)
             + 1j * jax.random.normal(k_gi, (C,), dtype=jnp.float32)
             ).astype(jnp.complex64)
    beta = (jax.random.normal(k_br, (C,), dtype=jnp.float32)
            + 1j * jax.random.normal(k_bi, (C,), dtype=jnp.float32)
            ).astype(jnp.complex64)

    out = jax.jit(frequency_batch_norm_2d)(x, gamma, beta)
    out = jax.block_until_ready(out)

    # Pure-JAX reference (mirrors the PyTorch forward exactly).
    mean = jnp.mean(x, axis=(-2, -1), keepdims=True)
    cen = x - mean
    var = jnp.mean(jnp.abs(cen) ** 2, axis=(-2, -1), keepdims=True)  # real
    ref = (gamma.reshape(1, -1, 1, 1) * (cen / jnp.sqrt(var + EPS))
           + beta.reshape(1, -1, 1, 1))

    assert out.shape == (N, C, H, W) and out.dtype == jnp.complex64
    assert float(jnp.max(jnp.abs(out - ref))) < 1e-4

    print("KERNEL_OK")
</pallas_src>

<mosaic_0001>
module attributes {stable_mosaic.version = 11 : i64} {
  func.func @fbn_kernel(%arg0: i32, %arg1: memref<8x256xf32, #tpu.memory_space<vmem>>, %arg2: memref<8x256xf32, #tpu.memory_space<vmem>>, %arg3: memref<8x1xf32, #tpu.memory_space<vmem>>, %arg4: memref<8x1xf32, #tpu.memory_space<vmem>>, %arg5: memref<8x1xf32, #tpu.memory_space<vmem>>, %arg6: memref<8x1xf32, #tpu.memory_space<vmem>>, %arg7: memref<8x256xf32, #tpu.memory_space<vmem>>, %arg8: memref<8x256xf32, #tpu.memory_space<vmem>>) attributes {dimension_semantics = [#tpu.dimension_semantics<parallel>], iteration_bounds = array<i64: 1>, scalar_prefetch = 0 : i64, scratch_operands = 0 : i64, tpu.core_type = #tpu.core_type<tc>, window_params = [{transform_indices = @transform_0, window_bounds = array<i64: 8, 256>}, {transform_indices = @transform_1, window_bounds = array<i64: 8, 256>}, {transform_indices = @transform_2, window_bounds = array<i64: 8, 1>}, {transform_indices = @transform_3, window_bounds = array<i64: 8, 1>}, {transform_indices = @transform_4, window_bounds = array<i64: 8, 1>}, {transform_indices = @transform_5, window_bounds = array<i64: 8, 1>}, {transform_indices = @transform_6, window_bounds = array<i64: 8, 256>}, {transform_indices = @transform_7, window_bounds = array<i64: 8, 256>}]} {
    %c0 = arith.constant 0 : index
    %c0_0 = arith.constant 0 : index
    %0 = vector.load %arg1[%c0, %c0_0] : memref<8x256xf32, #tpu.memory_space<vmem>>, vector<8x256xf32>
    %c0_1 = arith.constant 0 : index
    %c0_2 = arith.constant 0 : index
    %1 = vector.load %arg2[%c0_1, %c0_2] : memref<8x256xf32, #tpu.memory_space<vmem>>, vector<8x256xf32>
    %cst = arith.constant dense<0.000000e+00> : vector<8xf32>
    %2 = vector.multi_reduction <add>, %0, %cst [1] : vector<8x256xf32> to vector<8xf32>
    %3 = vector.shape_cast %2 : vector<8xf32> to vector<8x1xf32>
    %cst_3 = arith.constant 2.560000e+02 : f32
    %4 = vector.broadcast %cst_3 : f32 to vector<8x1xf32>
    %5 = arith.divf %3, %4 : vector<8x1xf32>
    %cst_4 = arith.constant dense<0.000000e+00> : vector<8xf32>
    %6 = vector.multi_reduction <add>, %1, %cst_4 [1] : vector<8x256xf32> to vector<8xf32>
    %7 = vector.shape_cast %6 : vector<8xf32> to vector<8x1xf32>
    %cst_5 = arith.constant 2.560000e+02 : f32
    %8 = vector.broadcast %cst_5 : f32 to vector<8x1xf32>
    %9 = arith.divf %7, %8 : vector<8x1xf32>
    %10 = vector.broadcast %5 : vector<8x1xf32> to vector<8x256xf32>
    %11 = arith.subf %0, %10 : vector<8x256xf32>
    %12 = vector.broadcast %9 : vector<8x1xf32> to vector<8x256xf32>
    %13 = arith.subf %1, %12 : vector<8x256xf32>
    %14 = arith.mulf %11, %11 : vector<8x256xf32>
    %cst_6 = arith.constant dense<0.000000e+00> : vector<8xf32>
    %15 = vector.multi_reduction <add>, %14, %cst_6 [1] : vector<8x256xf32> to vector<8xf32>
    %16 = vector.shape_cast %15 : vector<8xf32> to vector<8x1xf32>
    %cst_7 = arith.constant 2.560000e+02 : f32
    %17 = vector.broadcast %cst_7 : f32 to vector<8x1xf32>
    %18 = arith.divf %16, %17 : vector<8x1xf32>
    %19 = arith.mulf %13, %13 : vector<8x256xf32>
    %cst_8 = arith.constant dense<0.000000e+00> : vector<8xf32>
    %20 = vector.multi_reduction <add>, %19, %cst_8 [1] : vector<8x256xf32> to vector<8xf32>
    %21 = vector.shape_cast %20 : vector<8xf32> to vector<8x1xf32>
    %cst_9 = arith.constant 2.560000e+02 : f32
    %22 = vector.broadcast %cst_9 : f32 to vector<8x1xf32>
    %23 = arith.divf %21, %22 : vector<8x1xf32>
    %24 = arith.addf %18, %23 : vector<8x1xf32>
    %cst_10 = arith.constant 9.99999974E-6 : f32
    %25 = vector.broadcast %cst_10 : f32 to vector<8x1xf32>
    %26 = arith.addf %24, %25 : vector<8x1xf32>
    %27 = math.rsqrt %26 : vector<8x1xf32>
    %28 = vector.broadcast %27 : vector<8x1xf32> to vector<8x256xf32>
    %29 = arith.mulf %11, %28 : vector<8x256xf32>
    %30 = vector.broadcast %27 : vector<8x1xf32> to vector<8x256xf32>
    %31 = arith.mulf %13, %30 : vector<8x256xf32>
    %c0_11 = arith.constant 0 : index
    %c0_12 = arith.constant 0 : index
    %32 = vector.load %arg3[%c0_11, %c0_12] : memref<8x1xf32, #tpu.memory_space<vmem>>, vector<8x1xf32>
    %c0_13 = arith.constant 0 : index
    %c0_14 = arith.constant 0 : index
    %33 = vector.load %arg4[%c0_13, %c0_14] : memref<8x1xf32, #tpu.memory_space<vmem>>, vector<8x1xf32>
    %c0_15 = arith.constant 0 : index
    %c0_16 = arith.constant 0 : index
    %34 = vector.load %arg5[%c0_15, %c0_16] : memref<8x1xf32, #tpu.memory_space<vmem>>, vector<8x1xf32>
    %c0_17 = arith.constant 0 : index
    %c0_18 = arith.constant 0 : index
    %35 = vector.load %arg6[%c0_17, %c0_18] : memref<8x1xf32, #tpu.memory_space<vmem>>, vector<8x1xf32>
    %36 = vector.broadcast %32 : vector<8x1xf32> to vector<8x256xf32>
    %37 = arith.mulf %36, %29 : vector<8x256xf32>
    %38 = vector.broadcast %33 : vector<8x1xf32> to vector<8x256xf32>
    %39 = arith.mulf %38, %31 : vector<8x256xf32>
    %40 = arith.subf %37, %39 : vector<8x256xf32>
    %41 = vector.broadcast %34 : vector<8x1xf32> to vector<8x256xf32>
    %42 = arith.addf %40, %41 : vector<8x256xf32>
    %c0_19 = arith.constant 0 : index
    %c0_20 = arith.constant 0 : index
    %43 = vector.load %arg7[%c0_19, %c0_20] : memref<8x256xf32, #tpu.memory_space<vmem>>, vector<8x256xf32>
    tpu.vector_store %arg7[%c0_19, %c0_20], %42 {strides = array<i32>} : memref<8x256xf32, #tpu.memory_space<vmem>>, vector<8x256xf32>,
    %44 = vector.broadcast %32 : vector<8x1xf32> to vector<8x256xf32>
    %45 = arith.mulf %44, %31 : vector<8x256xf32>
    %46 = vector.broadcast %33 : vector<8x1xf32> to vector<8x256xf32>
    %47 = arith.mulf %46, %29 : vector<8x256xf32>
    %48 = arith.addf %45, %47 : vector<8x256xf32>
    %49 = vector.broadcast %35 : vector<8x1xf32> to vector<8x256xf32>
    %50 = arith.addf %48, %49 : vector<8x256xf32>
    %c0_21 = arith.constant 0 : index
    %c0_22 = arith.constant 0 : index
    %51 = vector.load %arg8[%c0_21, %c0_22] : memref<8x256xf32, #tpu.memory_space<vmem>>, vector<8x256xf32>
    tpu.vector_store %arg8[%c0_21, %c0_22], %50 {strides = array<i32>} : memref<8x256xf32, #tpu.memory_space<vmem>>, vector<8x256xf32>,
    return
  }
  func.func @transform_0(%arg0: i32) -> (i32, i32) {
    %c0_i32 = arith.constant 0 : i32
    %c0_i32_0 = arith.constant 0 : i32
    return %arg0, %c0_i32 : i32, i32
  }
  func.func @transform_1(%arg0: i32) -> (i32, i32) {
    %c0_i32 = arith.constant 0 : i32
    %c0_i32_0 = arith.constant 0 : i32
    return %arg0, %c0_i32 : i32, i32
  }
  func.func @transform_2(%arg0: i32) -> (i32, i32) {
    %c0_i32 = arith.constant 0 : i32
    %c0_i32_0 = arith.constant 0 : i32
    return %arg0, %c0_i32 : i32, i32
  }
  func.func @transform_3(%arg0: i32) -> (i32, i32) {
    %c0_i32 = arith.constant 0 : i32
    %c0_i32_0 = arith.constant 0 : i32
    return %arg0, %c0_i32 : i32, i32
  }
  func.func @transform_4(%arg0: i32) -> (i32, i32) {
    %c0_i32 = arith.constant 0 : i32
    %c0_i32_0 = arith.constant 0 : i32
    return %arg0, %c0_i32 : i32, i32
  }
  func.func @transform_5(%arg0: i32) -> (i32, i32) {
    %c0_i32 = arith.constant 0 : i32
    %c0_i32_0 = arith.constant 0 : i32
    return %arg0, %c0_i32 : i32, i32
  }
  func.func @transform_6(%arg0: i32) -> (i32, i32) {
    %c0_i32 = arith.constant 0 : i32
    %c0_i32_0 = arith.constant 0 : i32
    return %arg0, %c0_i32 : i32, i32
  }
  func.func @transform_7(%arg0: i32) -> (i32, i32) {
    %c0_i32 = arith.constant 0 : i32
    %c0_i32_0 = arith.constant 0 : i32
    return %arg0, %c0_i32 : i32, i32
  }
}

</mosaic_0001>

<llo_original>
// kernel: custom-call.3
$region0: #{custom-call.3}
  %s0 = inlined_call_operand.hbm [shape: c64[4], index: 0, kind: input, shape index: {}]
  %s1 = inlined_call_operand.vmem [shape: f32[4], index: 1, kind: output, shape index: {}]
  %s2 = scalar_lea.hbm %s0, 16
  $region1: #{custom-call.3} parent=0
    #allocation0 [shape = 's32[1]{0}', space=sflag, size = 0x4, scoped, tag = 'scoped memory for custom-call.3']
    %3 = vsyncpa [#allocation0], 0
    %s4 = sshll.u32 %s1, 4
    %s5 = int_to_ptr.vmem [resolvable:$true] %s4
    %7 = dma.hbm_to_vmem [thread:$0]  %s2, 16, %s5, [#allocation0]
    %8 = dma.done [#allocation0], 16
    %9 = vsyncpa [#allocation0], 1

// kernel: custom-call.2
$region0: #{custom-call.2}
  %s0 = inlined_call_operand.hbm [shape: c64[4], index: 0, kind: input, shape index: {}]
  %s1 = inlined_call_operand.vmem [shape: f32[4], index: 1, kind: output, shape index: {}]
  $region1: #{custom-call.2} parent=0
    #allocation0 [shape = 's32[1]{0}', space=sflag, size = 0x4, scoped, tag = 'scoped memory for custom-call.2']
    %2 = vsyncpa [#allocation0], 0
    %s3 = sshll.u32 %s1, 4
    %s4 = int_to_ptr.vmem [resolvable:$true] %s3
    %6 = dma.hbm_to_vmem [thread:$0]  %s0, 16, %s4, [#allocation0]
    %7 = dma.done [#allocation0], 16
    %8 = vsyncpa [#allocation0], 1

// kernel: custom-call.1
$region0: #{custom-call.1}
  %s0 = inlined_call_operand.hbm [shape: c64[2,4,16,16], index: 0, kind: input, shape index: {}]
  %s1 = inlined_call_operand.vmem [shape: f32[2,4,16,16], index: 1, kind: output, shape index: {}]
  %s2 = scalar_lea.hbm %s0, 2048
  $region1: #{custom-call.1} parent=0
    #allocation0 [shape = 's32[1]{0}', space=sflag, size = 0x4, scoped, tag = 'scoped memory for custom-call.1']
    %3 = vsyncpa [#allocation0], 0
    %s4 = sshll.u32 %s1, 4
    %s5 = int_to_ptr.vmem [resolvable:$true] %s4
    %7 = dma.hbm_to_vmem [thread:$0]  %s2, 2048, %s5, [#allocation0]
    %8 = dma.done [#allocation0], 2048
    %9 = vsyncpa [#allocation0], 1

// kernel: custom-call
$region0: #{custom-call}
  %s0 = inlined_call_operand.hbm [shape: c64[2,4,16,16], index: 0, kind: input, shape index: {}]
  %s1 = inlined_call_operand.vmem [shape: f32[2,4,16,16], index: 1, kind: output, shape index: {}]
  $region1: #{custom-call} parent=0
    #allocation0 [shape = 's32[1]{0}', space=sflag, size = 0x4, scoped, tag = 'scoped memory for custom-call']
    %2 = vsyncpa [#allocation0], 0
    %s3 = sshll.u32 %s1, 4
    %s4 = int_to_ptr.vmem [resolvable:$true] %s3
    %6 = dma.hbm_to_vmem [thread:$0]  %s0, 2048, %s4, [#allocation0]
    %7 = dma.done [#allocation0], 2048
    %8 = vsyncpa [#allocation0], 1

// kernel: custom-call.6
$region0: #{custom-call.6}
  %s0 = inlined_call_operand.vmem [shape: f32[2,4,16,16], index: 0, kind: input, shape index: {}]
  %s1 = inlined_call_operand.vmem [shape: f32[2,4,16,16], index: 1, kind: input, shape index: {}]
  %s2 = inlined_call_operand.hbm [shape: c64[2,4,16,16], index: 2, kind: output, shape index: {}]
  %s3 = scalar_lea.hbm %s2, 2048
  $region1: #{custom-call.6} parent=0
    #allocation0 [shape = 's32[1]{0}', space=sflag, size = 0x4, scoped, tag = 'scoped memory for custom-call.6']
    %4 = vsyncpa [#allocation0], 0
    %s5 = sshll.u32 %s0, 4
    %s6 = int_to_ptr.vmem [resolvable:$true] %s5
    %8 = dma.vmem_to_hbm [thread:$0]  %s6, 2048, %s2, [#allocation0]
    %9 = dma.done [#allocation0], 2048
    %10 = vsyncpa [#allocation0], 1
  $region2: #{custom-call.6} parent=0
    #allocation1 [shape = 's32[1]{0}', space=sflag, size = 0x4, scoped, tag = 'scoped memory for custom-call.6']
    %11 = vsyncpa [#allocation1], 0
    %s12 = sshll.u32 %s1, 4
    %s13 = int_to_ptr.vmem [resolvable:$true] %s12
    %15 = dma.vmem_to_hbm [thread:$0]  %s13, 2048, %s3, [#allocation1]
    %16 = dma.done [#allocation1], 2048
    %17 = vsyncpa [#allocation1], 1

// kernel: frequency_batch_norm_2d.1
$region0: #{frequency_batch_norm_2d.1}
  #allocation0 [shape = 'u32[]', space=smem, size = 0x4, offset = 0x4, fixed_abs, tag = 'smem constant byte address 0x4 - core index']
  #allocation1 [shape = 'u32[144,128]{1,0:T(1,128)}', space=vmem, size = 0x12000, scoped, tag = 'internal scratch']
  %s0 = inlined_call_operand.vmem [shape: f32[8,256], index: 0, kind: input, shape index: {}]
  %s1 = inlined_call_operand.vmem [shape: f32[8,256], index: 1, kind: input, shape index: {}]
  %s2 = inlined_call_operand.vmem [shape: f32[8,1], index: 2, kind: input, shape index: {}]
  %s3 = inlined_call_operand.vmem [shape: f32[8,1], index: 3, kind: input, shape index: {}]
  %s4 = inlined_call_operand.vmem [shape: f32[8,1], index: 4, kind: input, shape index: {}]
  %s5 = inlined_call_operand.vmem [shape: f32[8,1], index: 5, kind: input, shape index: {}]
  %s6 = inlined_call_operand.vmem [shape: f32[8,256], index: 6, kind: output, shape index: {0}]
  %s7 = inlined_call_operand.vmem [shape: f32[8,256], index: 7, kind: output, shape index: {1}]
  %8 = xla_tuple %s6, %s7
  %s9 = sld [smem:[#allocation0]]
  $region42: #{frequency_batch_norm_2d.1} parent=0
    _
  %s11 = ssub.s32 1, %s9
  %s12 = scalar_select 0, %s11, %s9
  // Predicated region
  $region2: #{frequency_batch_norm_2d.1} parent=0 // pred_check
    _
  $region3: #{frequency_batch_norm_2d.1} parent=0 // pred_check_branch
    %14 = sbr.rel (0) target = $region5
  $region4: #{frequency_batch_norm_2d.1} parent=0 // pred_region
    _
  $region5: #{frequency_batch_norm_2d.1} parent=0 // pred_fallthru
    _
  // Predicated region
  $region6: #{frequency_batch_norm_2d.1} parent=0 // pred_check
    _
  $region7: #{frequency_batch_norm_2d.1} parent=0 // pred_check_branch
    %16 = sbr.rel (0) target = $region9
  $region8: #{frequency_batch_norm_2d.1} parent=0 // pred_region
    _
  $region9: #{frequency_batch_norm_2d.1} parent=0 // pred_fallthru
    _
  // Predicated region
  $region10: #{frequency_batch_norm_2d.1} parent=0 // pred_check
    _
  $region11: #{frequency_batch_norm_2d.1} parent=0 // pred_check_branch
    %18 = sbr.rel (0) target = $region13
  $region12: #{frequency_batch_norm_2d.1} parent=0 // pred_region
    _
  $region13: #{frequency_batch_norm_2d.1} parent=0 // pred_fallthru
    _
  // Predicated region
  $region14: #{frequency_batch_norm_2d.1} parent=0 // pred_check
    _
  $region15: #{frequency_batch_norm_2d.1} parent=0 // pred_check_branch
    %20 = sbr.rel (0) target = $region17
  $region16: #{frequency_batch_norm_2d.1} parent=0 // pred_region
    _
  $region17: #{frequency_batch_norm_2d.1} parent=0 // pred_fallthru
    _
  // Predicated region
  $region18: #{frequency_batch_norm_2d.1} parent=0 // pred_check
    _
  $region19: #{frequency_batch_norm_2d.1} parent=0 // pred_check_branch
    %22 = sbr.rel (0) target = $region21
  $region20: #{frequency_batch_norm_2d.1} parent=0 // pred_region
    _
  $region21: #{frequency_batch_norm_2d.1} parent=0 // pred_fallthru
    _
  // Predicated region
  $region22: #{frequency_batch_norm_2d.1} parent=0 // pred_check
    _
  $region23: #{frequency_batch_norm_2d.1} parent=0 // pred_check_branch
    %24 = sbr.rel (0) target = $region25
  $region24: #{frequency_batch_norm_2d.1} parent=0 // pred_region
    _
  $region25: #{frequency_batch_norm_2d.1} parent=0 // pred_fallthru
    _
  %v25 = vld [vmem:[%s0] sm:$0xff]
  %v26 = vld [vmem:[%s0 + $0x8] sm:$0xff]
  %v27 = vld [vmem:[%s1] sm:$0xff]
  %v28 = vld [vmem:[%s1 + $0x8] sm:$0xff]
  %v29 = vadd.f32 %v25, %v26
  %30 = vadd.xlane.f32.xlu0 %v29
  %v31 = vpop.xlane.xlu0 %30
  %v32 = vrcp.pop 256.0
  %v33 = vmul.f32 %v31, %v32
  %v34 = vadd.f32 %v27, %v28
  %35 = vadd.xlane.f32.xlu0 %v34
  %v36 = vpop.xlane.xlu0 %35
  %v37 = vmul.f32 %v36, %v32
  %v38 = vsub.f32 %v25, %v33
  %v39 = vsub.f32 %v26, %v33
  %v40 = vsub.f32 %v27, %v37
  %v41 = vsub.f32 %v28, %v37
  %v42 = vmul.f32 %v38, %v38
  %v43 = vmul.f32 %v39, %v39
  %v44 = vadd.f32 %v42, %v43
  %45 = vadd.xlane.f32.xlu0 %v44
  %v46 = vpop.xlane.xlu0 %45
  %v47 = vmul.f32 %v46, %v32
  %v48 = vmul.f32 %v40, %v40
  %v49 = vmul.f32 %v41, %v41
  %v50 = vadd.f32 %v48, %v49
  %51 = vadd.xlane.f32.xlu0 %v50
  %v52 = vpop.xlane.xlu0 %51
  %v53 = vmul.f32 %v52, %v32
  %v54 = vadd.f32 %v47, %v53
  %v55 = vadd.f32 %v54, 1e-05
  %v56 = vrsqrt.pop %v55
  %v57 = vmul.f32 %v38, %v56
  %v58 = vmul.f32 %v39, %v56
  %v59 = vmul.f32 %v40, %v56
  %v60 = vmul.f32 %v41, %v56
  %v61 = vld [vmem:[%s2] sm:$0xff]
  %v62 = vld [vmem:[%s3] sm:$0xff]
  %v63 = vld [vmem:[%s4] sm:$0xff]
  %v64 = vld [vmem:[%s5] sm:$0xff]
  %66 = vset.pattern.permute.xlu0 0
  %67 = vperm.xlu0 %66, %v61
  %v68 = vpop.permute.xlu0 %67
  %v70 = vmul.f32 %v68, %v57
  %v71 = vmul.f32 %v68, %v58
  %73 = vset.pattern.permute.xlu0 0
  %74 = vperm.xlu0 %73, %v62
  %v75 = vpop.permute.xlu0 %74
  %v77 = vmul.f32 %v75, %v59
  %v78 = vmul.f32 %v75, %v60
  %v79 = vsub.f32 %v70, %v77
  %v80 = vsub.f32 %v71, %v78
  %82 = vset.pattern.permute.xlu0 0
  %83 = vperm.xlu0 %82, %v63
  %v84 = vpop.permute.xlu0 %83
  %v86 = vadd.f32 %v79, %v84
  %v87 = vadd.f32 %v80, %v84
  %88 = vst [vmem:[%s6] sm:$0xff] %v86
  %89 = vst [vmem:[%s6 + $0x8] sm:$0xff] %v87
  %v90 = vmul.f32 %v68, %v59
  %v91 = vmul.f32 %v68, %v60
  %v92 = vmul.f32 %v75, %v57
  %v93 = vmul.f32 %v75, %v58
  %v94 = vadd.f32 %v90, %v92
  %v95 = vadd.f32 %v91, %v93
  %97 = vset.pattern.permute.xlu0 0
  %98 = vperm.xlu0 %97, %v64
  %v99 = vpop.permute.xlu0 %98
  %v101 = vadd.f32 %v94, %v99
  %v102 = vadd.f32 %v95, %v99
  %103 = vst [vmem:[%s7] sm:$0xff] %v101
  %104 = vst [vmem:[%s7 + $0x8] sm:$0xff] %v102
  // Predicated region
  $region26: #{frequency_batch_norm_2d.1} parent=0 // pred_check
    _
  $region27: #{frequency_batch_norm_2d.1} parent=0 // pred_check_branch
    %106 = sbr.rel (0) target = $region29
  $region28: #{frequency_batch_norm_2d.1} parent=0 // pred_region
    _
  $region29: #{frequency_batch_norm_2d.1} parent=0 // pred_fallthru
    _
  // Predicated region
  $region30: #{frequency_batch_norm_2d.1} parent=0 // pred_check
    _
  $region31: #{frequency_batch_norm_2d.1} parent=0 // pred_check_branch
    %108 = sbr.rel (0) target = $region33
  $region32: #{frequency_batch_norm_2d.1} parent=0 // pred_region
    _
  $region33: #{frequency_batch_norm_2d.1} parent=0 // pred_fallthru
    _
  // Predicated region
  $region34: #{frequency_batch_norm_2d.1} parent=0 // pred_check
    _
  $region35: #{frequency_batch_norm_2d.1} parent=0 // pred_check_branch
    %110 = sbr.rel (0) target = $region37
  $region36: #{frequency_batch_norm_2d.1} parent=0 // pred_region
    _
  $region37: #{frequency_batch_norm_2d.1} parent=0 // pred_fallthru
    _
  // Predicated region
  $region38: #{frequency_batch_norm_2d.1} parent=0 // pred_check
    _
  $region39: #{frequency_batch_norm_2d.1} parent=0 // pred_check_branch
    %112 = sbr.rel (0) target = $region41
  $region40: #{frequency_batch_norm_2d.1} parent=0 // pred_region
    _
  $region41: #{frequency_batch_norm_2d.1} parent=0 // pred_fallthru
    _

</llo_original>
